<compile_context>
chip_gen: v7x
topology: tpu7x:2x2x1
jax: 0.10.0
libtpu: 0.0.40
codegen_flags: <defaults>
</compile_context>

<pallas_src>
import functools

import jax
import jax.numpy as jnp
from jax.experimental import pallas as pl
from jax.experimental.pallas import tpu as pltpu

LATENT_DIM = 32
HIDDEN_DIM = 128
D_IN = LATENT_DIM + HIDDEN_DIM      # 160
D_H1 = 256
D_H2 = 128
D_OUT = 1


def _round_up(n, m):
    return ((n + m - 1) // m) * m


def _mlp_kernel(x_ref, w1_ref, b1_ref, w2_ref, b2_ref, w3t_ref, b3_ref, o_ref):
    # x_ref: (tm, D_IN) bf16 tile of rows; weights resident in VMEM.
    x = x_ref[...]                                                   # bf16
    h1 = jnp.dot(x, w1_ref[...], preferred_element_type=jnp.float32)
    h1 = jnp.maximum(h1 + b1_ref[...], 0.0)                          # f32
    h2 = jnp.dot(h1.astype(jnp.bfloat16), w2_ref[...],
                 preferred_element_type=jnp.float32)
    h2 = jnp.maximum(h2 + b2_ref[...], 0.0)                          # f32 (tm, 128)
    # Final 128 -> 1 projection on the VPU/XLU (idle slots) instead of the MXU.
    out = jnp.sum(h2 * w3t_ref[...], axis=-1, keepdims=True) + b3_ref[...]
    o_ref[...] = out.astype(o_ref.dtype)


@functools.partial(jax.jit, static_argnames=("tm",))
def reward_predictor(x, params, *, tm=512):
    """x: (B, S, D_IN) float32 -> rewards: (B, S, 1) float32."""
    w1, b1, w2, b2, w3, b3 = params
    B, S, D = x.shape
    assert D == D_IN
    M = B * S

    # Row tile: multiple of 8 (sublane), large (>=128) for MXU occupancy on
    # realistic B*S, clamped so tiny inputs need no padding / extra grid steps.
    tm_eff = min(tm, _round_up(M, 8))
    grid = (pl.cdiv(M, tm_eff),)

    # bf16 operands for the MXU (halves input HBM traffic, ~3x MXU throughput);
    # biases and the final projection stay f32.
    x2d = x.reshape(M, D).astype(jnp.bfloat16)
    w1b = w1.astype(jnp.bfloat16)
    w2b = w2.astype(jnp.bfloat16)
    w3t = w3.reshape(1, D_H2).astype(jnp.float32)   # row layout for VPU reduce

    out = pl.pallas_call(
        _mlp_kernel,
        out_shape=jax.ShapeDtypeStruct((M, D_OUT), jnp.float32),
        grid_spec=pltpu.PrefetchScalarGridSpec(
            num_scalar_prefetch=0,
            grid=grid,
            in_specs=[
                pl.BlockSpec((tm_eff, D_IN), lambda i: (i, 0)),
                pl.BlockSpec((D_IN, D_H1), lambda i: (0, 0)),
                pl.BlockSpec((1, D_H1), lambda i: (0, 0)),
                pl.BlockSpec((D_H1, D_H2), lambda i: (0, 0)),
                pl.BlockSpec((1, D_H2), lambda i: (0, 0)),
                pl.BlockSpec((1, D_H2), lambda i: (0, 0)),
                pl.BlockSpec((1, D_OUT), lambda i: (0, 0)),
            ],
            out_specs=pl.BlockSpec((tm_eff, D_OUT), lambda i: (i, 0)),
        ),
        compiler_params=pltpu.CompilerParams(
            dimension_semantics=("parallel",),
        ),
    )(x2d, w1b, b1, w2b, b2, w3t, b3)

    return out.reshape(B, S, D_OUT)


def init_params(key):
    """Deterministic synthetic params; weights stored (in_dim, out_dim), f32."""
    k1, k2, k3 = jax.random.split(key, 3)

    def lin(k, din, dout):
        # torch-like uniform(-1/sqrt(din), 1/sqrt(din)) init
        bound = 1.0 / jnp.sqrt(float(din))
        w = jax.random.uniform(k, (din, dout), jnp.float32, -bound, bound)
        b = jnp.zeros((1, dout), jnp.float32)
        return w, b

    w1, b1 = lin(k1, D_IN, D_H1)
    w2, b2 = lin(k2, D_H1, D_H2)
    w3, b3 = lin(k3, D_H2, D_OUT)
    return (w1, b1, w2, b2, w3, b3)


def reference_f32(x, params):
    w1, b1, w2, b2, w3, b3 = params
    h1 = jnp.maximum(x @ w1 + b1, 0.0)
    h2 = jnp.maximum(h1 @ w2 + b2, 0.0)
    return h2 @ w3 + b3


def reference_bf16(x, params):
    """Mimics the kernel numerics: bf16 matmul operands, f32 accum/bias/ReLU."""
    w1, b1, w2, b2, w3, b3 = params
    xb = x.astype(jnp.bfloat16)
    h1 = jnp.dot(xb, w1.astype(jnp.bfloat16),
                 preferred_element_type=jnp.float32) + b1
    h1 = jnp.maximum(h1, 0.0)
    h2 = jnp.dot(h1.astype(jnp.bfloat16), w2.astype(jnp.bfloat16),
                 preferred_element_type=jnp.float32) + b2
    h2 = jnp.maximum(h2, 0.0)
    return h2 @ w3 + b3


if __name__ == "__main__":
    key = jax.random.PRNGKey(0)
    kx, kp = jax.random.split(key)

    B, S = 2, 8
    x = jax.random.normal(kx, (B, S, D_IN), jnp.float32)
    params = init_params(kp)

    out = reward_predictor(x, params)
    out = jax.block_until_ready(out)

    assert out.shape == (B, S, 1), out.shape

    ref_bf = reference_bf16(x, params)
    assert jnp.allclose(out, ref_bf, atol=5e-3, rtol=5e-3), float(
        jnp.max(jnp.abs(out - ref_bf))
    )
    ref_f32 = reference_f32(x, params)
    assert jnp.allclose(out, ref_f32, atol=1e-1, rtol=1e-1), float(
        jnp.max(jnp.abs(out - ref_f32))
    )

    print("KERNEL_OK")
</pallas_src>

<mosaic_0001>
module attributes {stable_mosaic.version = 11 : i64} {
  func.func @_mlp_kernel(%arg0: i32, %arg1: memref<16x160xbf16, #tpu.memory_space<vmem>>, %arg2: memref<160x256xbf16, #tpu.memory_space<vmem>>, %arg3: memref<1x256xf32, #tpu.memory_space<vmem>>, %arg4: memref<256x128xbf16, #tpu.memory_space<vmem>>, %arg5: memref<1x128xf32, #tpu.memory_space<vmem>>, %arg6: memref<1x128xf32, #tpu.memory_space<vmem>>, %arg7: memref<1x1xf32, #tpu.memory_space<vmem>>, %arg8: memref<16x1xf32, #tpu.memory_space<vmem>>) attributes {dimension_semantics = [#tpu.dimension_semantics<parallel>], iteration_bounds = array<i64: 1>, scalar_prefetch = 0 : i64, scratch_operands = 0 : i64, tpu.core_type = #tpu.core_type<tc>, window_params = [{transform_indices = @transform_0, window_bounds = array<i64: 16, 160>}, {pipeline_mode = #tpu.pipeline_mode<synchronous>, transform_indices = @transform_1, window_bounds = array<i64: 160, 256>}, {pipeline_mode = #tpu.pipeline_mode<synchronous>, transform_indices = @transform_2, window_bounds = array<i64: 1, 256>}, {pipeline_mode = #tpu.pipeline_mode<synchronous>, transform_indices = @transform_3, window_bounds = array<i64: 256, 128>}, {pipeline_mode = #tpu.pipeline_mode<synchronous>, transform_indices = @transform_4, window_bounds = array<i64: 1, 128>}, {pipeline_mode = #tpu.pipeline_mode<synchronous>, transform_indices = @transform_5, window_bounds = array<i64: 1, 128>}, {pipeline_mode = #tpu.pipeline_mode<synchronous>, transform_indices = @transform_6, window_bounds = array<i64: 1, 1>}, {transform_indices = @transform_7, window_bounds = array<i64: 16, 1>}]} {
    %c0 = arith.constant 0 : index
    %c0_0 = arith.constant 0 : index
    %0 = vector.load %arg1[%c0, %c0_0] : memref<16x160xbf16, #tpu.memory_space<vmem>>, vector<16x160xbf16>
    %c0_1 = arith.constant 0 : index
    %c0_2 = arith.constant 0 : index
    %1 = vector.load %arg2[%c0_1, %c0_2] : memref<160x256xbf16, #tpu.memory_space<vmem>>, vector<160x256xbf16>
    %cst = arith.constant dense<0.000000e+00> : vector<16x256xf32>
    %2 = tpu.matmul %0, %1, %cst {dimension_numbers = #tpu.dot_dimension_numbers<[1], [0], [0], [1], [0, 0, 1, 1], [], []>} : vector<16x160xbf16>, vector<160x256xbf16>, vector<16x256xf32> -> vector<16x256xf32>
    %c0_3 = arith.constant 0 : index
    %c0_4 = arith.constant 0 : index
    %3 = vector.load %arg3[%c0_3, %c0_4] : memref<1x256xf32, #tpu.memory_space<vmem>>, vector<1x256xf32>
    %4 = vector.broadcast %3 : vector<1x256xf32> to vector<16x256xf32>
    %5 = arith.addf %2, %4 : vector<16x256xf32>
    %cst_5 = arith.constant 0.000000e+00 : f32
    %6 = vector.broadcast %cst_5 : f32 to vector<16x256xf32>
    %7 = arith.maximumf %5, %6 : vector<16x256xf32>
    %8 = arith.truncf %7 : vector<16x256xf32> to vector<16x256xbf16>
    %c0_6 = arith.constant 0 : index
    %c0_7 = arith.constant 0 : index
    %9 = vector.load %arg4[%c0_6, %c0_7] : memref<256x128xbf16, #tpu.memory_space<vmem>>, vector<256x128xbf16>
    %cst_8 = arith.constant dense<0.000000e+00> : vector<16x128xf32>
    %10 = tpu.matmul %8, %9, %cst_8 {dimension_numbers = #tpu.dot_dimension_numbers<[1], [0], [0], [1], [0, 0, 1, 1], [], []>} : vector<16x256xbf16>, vector<256x128xbf16>, vector<16x128xf32> -> vector<16x128xf32>
    %c0_9 = arith.constant 0 : index
    %c0_10 = arith.constant 0 : index
    %11 = vector.load %arg5[%c0_9, %c0_10] : memref<1x128xf32, #tpu.memory_space<vmem>>, vector<1x128xf32>
    %12 = vector.broadcast %11 : vector<1x128xf32> to vector<16x128xf32>
    %13 = arith.addf %10, %12 : vector<16x128xf32>
    %cst_11 = arith.constant 0.000000e+00 : f32
    %14 = vector.broadcast %cst_11 : f32 to vector<16x128xf32>
    %15 = arith.maximumf %13, %14 : vector<16x128xf32>
    %c0_12 = arith.constant 0 : index
    %c0_13 = arith.constant 0 : index
    %16 = vector.load %arg6[%c0_12, %c0_13] : memref<1x128xf32, #tpu.memory_space<vmem>>, vector<1x128xf32>
    %17 = vector.broadcast %16 : vector<1x128xf32> to vector<16x128xf32>
    %18 = arith.mulf %15, %17 : vector<16x128xf32>
    %cst_14 = arith.constant dense<0.000000e+00> : vector<16xf32>
    %19 = vector.multi_reduction <add>, %18, %cst_14 [1] : vector<16x128xf32> to vector<16xf32>
    %20 = vector.shape_cast %19 : vector<16xf32> to vector<16x1xf32>
    %c0_15 = arith.constant 0 : index
    %c0_16 = arith.constant 0 : index
    %21 = vector.load %arg7[%c0_15, %c0_16] : memref<1x1xf32, #tpu.memory_space<vmem>>, vector<1x1xf32>
    %22 = vector.broadcast %21 : vector<1x1xf32> to vector<16x1xf32>
    %23 = arith.addf %20, %22 : vector<16x1xf32>
    %c0_17 = arith.constant 0 : index
    %c0_18 = arith.constant 0 : index
    %24 = vector.load %arg8[%c0_17, %c0_18] : memref<16x1xf32, #tpu.memory_space<vmem>>, vector<16x1xf32>
    tpu.vector_store %arg8[%c0_17, %c0_18], %23 {strides = array<i32>} : memref<16x1xf32, #tpu.memory_space<vmem>>, vector<16x1xf32>,
    return
  }
  func.func @transform_0(%arg0: i32) -> (i32, i32) {
    %c0_i32 = arith.constant 0 : i32
    %c0_i32_0 = arith.constant 0 : i32
    return %arg0, %c0_i32 : i32, i32
  }
  func.func @transform_1(%arg0: i32) -> (i32, i32) {
    %c0_i32 = arith.constant 0 : i32
    %c0_i32_0 = arith.constant 0 : i32
    %c0_i32_1 = arith.constant 0 : i32
    return %c0_i32, %c0_i32_0 : i32, i32
  }
  func.func @transform_2(%arg0: i32) -> (i32, i32) {
    %c0_i32 = arith.constant 0 : i32
    %c0_i32_0 = arith.constant 0 : i32
    %c0_i32_1 = arith.constant 0 : i32
    return %c0_i32, %c0_i32_0 : i32, i32
  }
  func.func @transform_3(%arg0: i32) -> (i32, i32) {
    %c0_i32 = arith.constant 0 : i32
    %c0_i32_0 = arith.constant 0 : i32
    %c0_i32_1 = arith.constant 0 : i32
    return %c0_i32, %c0_i32_0 : i32, i32
  }
  func.func @transform_4(%arg0: i32) -> (i32, i32) {
    %c0_i32 = arith.constant 0 : i32
    %c0_i32_0 = arith.constant 0 : i32
    %c0_i32_1 = arith.constant 0 : i32
    return %c0_i32, %c0_i32_0 : i32, i32
  }
  func.func @transform_5(%arg0: i32) -> (i32, i32) {
    %c0_i32 = arith.constant 0 : i32
    %c0_i32_0 = arith.constant 0 : i32
    %c0_i32_1 = arith.constant 0 : i32
    return %c0_i32, %c0_i32_0 : i32, i32
  }
  func.func @transform_6(%arg0: i32) -> (i32, i32) {
    %c0_i32 = arith.constant 0 : i32
    %c0_i32_0 = arith.constant 0 : i32
    %c0_i32_1 = arith.constant 0 : i32
    return %c0_i32, %c0_i32_0 : i32, i32
  }
  func.func @transform_7(%arg0: i32) -> (i32, i32) {
    %c0_i32 = arith.constant 0 : i32
    %c0_i32_0 = arith.constant 0 : i32
    return %arg0, %c0_i32 : i32, i32
  }
}

</mosaic_0001>

<llo_original>
// kernel: reward_predictor.1
$region0: #{reward_predictor.1}
  #allocation0 [shape = 'u32[]', space=smem, size = 0x4, offset = 0x4, fixed_abs, tag = 'smem constant byte address 0x4 - core index']
  #allocation1 [shape = 'u32[144,128]{1,0:T(1,128)}', space=vmem, size = 0x12000, scoped, tag = 'internal scratch']
  #allocation2 [shape = 'f32[1,1]{1,0:T(1,128)S(1)}', space=vmem, size = 0x200, scoped, tag = 'scoped memory for reward_predictor.1']
  %s0 = inlined_call_operand.vmem [shape: bf16[16,160], index: 0, kind: input, shape index: {}]
  %s1 = inlined_call_operand.vmem [shape: bf16[160,256], index: 1, kind: input, shape index: {}]
  %s2 = inlined_call_operand.vmem [shape: f32[1,256], index: 2, kind: input, shape index: {}]
  %s3 = inlined_call_operand.vmem [shape: bf16[256,128], index: 3, kind: input, shape index: {}]
  %s4 = inlined_call_operand.vmem [shape: f32[1,128], index: 4, kind: input, shape index: {}]
  %s5 = inlined_call_operand.vmem [shape: f32[1,128], index: 5, kind: input, shape index: {}]
  %s6 = inlined_call_operand.<no memory space> [shape: f32[1,1], index: 6, kind: input, shape index: {}]
  %s7 = inlined_call_operand.vmem [shape: f32[16,1], index: 7, kind: output, shape index: {}]
  %s8 = sld [smem:[#allocation0]]
  $region38: #{reward_predictor.1} parent=0
    _
  %s10 = ssub.s32 1, %s8
  %s11 = scalar_select 0, %s10, %s8
  %v12 = vstv %s6
  %13 = vst [vmem:[#allocation2] sm:$0x1] %v12
  // Predicated region
  $region2: #{reward_predictor.1} parent=0 // pred_check
    _
  $region3: #{reward_predictor.1} parent=0 // pred_check_branch
    %15 = sbr.rel (0) target = $region5
  $region4: #{reward_predictor.1} parent=0 // pred_region
    _
  $region5: #{reward_predictor.1} parent=0 // pred_fallthru
    _
  // Predicated region
  $region6: #{reward_predictor.1} parent=0 // pred_check
    _
  $region7: #{reward_predictor.1} parent=0 // pred_check_branch
    %17 = sbr.rel (0) target = $region9
  $region8: #{reward_predictor.1} parent=0 // pred_region
    _
  $region9: #{reward_predictor.1} parent=0 // pred_fallthru
    _
  // Predicated region
  $region10: #{reward_predictor.1} parent=0 // pred_check
    _
  $region11: #{reward_predictor.1} parent=0 // pred_check_branch
    %19 = sbr.rel (0) target = $region13
  $region12: #{reward_predictor.1} parent=0 // pred_region
    _
  $region13: #{reward_predictor.1} parent=0 // pred_fallthru
    _
  // Predicated region
  $region14: #{reward_predictor.1} parent=0 // pred_check
    _
  $region15: #{reward_predictor.1} parent=0 // pred_check_branch
    %21 = sbr.rel (0) target = $region17
  $region16: #{reward_predictor.1} parent=0 // pred_region
    _
  $region17: #{reward_predictor.1} parent=0 // pred_fallthru
    _
  // Predicated region
  $region18: #{reward_predictor.1} parent=0 // pred_check
    _
  $region19: #{reward_predictor.1} parent=0 // pred_check_branch
    %23 = sbr.rel (0) target = $region21
  $region20: #{reward_predictor.1} parent=0 // pred_region
    _
  $region21: #{reward_predictor.1} parent=0 // pred_fallthru
    _
  // Predicated region
  $region22: #{reward_predictor.1} parent=0 // pred_check
    _
  $region23: #{reward_predictor.1} parent=0 // pred_check_branch
    %25 = sbr.rel (0) target = $region25
  $region24: #{reward_predictor.1} parent=0 // pred_region
    _
  $region25: #{reward_predictor.1} parent=0 // pred_fallthru
    _
  // Predicated region
  $region26: #{reward_predictor.1} parent=0 // pred_check
    _
  $region27: #{reward_predictor.1} parent=0 // pred_check_branch
    %27 = sbr.rel (0) target = $region29
  $region28: #{reward_predictor.1} parent=0 // pred_region
    _
  $region29: #{reward_predictor.1} parent=0 // pred_fallthru
    _
  %v29 = vld [vmem:[%s0] sm:$0xff]
  %v30 = vld [vmem:[%s0 + $0x8] sm:$0xff]
  %v31 = vld [vmem:[%s1] sm:$0xff]
  %v32 = vld [vmem:[%s1 + $0x8] sm:$0xff]
  %v33 = vld [vmem:[%s1 + $0x10] sm:$0xff]
  %v34 = vld [vmem:[%s1 + $0x18] sm:$0xff]
  %v35 = vld [vmem:[%s1 + $0x20] sm:$0xff]
  %v36 = vld [vmem:[%s1 + $0x28] sm:$0xff]
  %v37 = vld [vmem:[%s1 + $0x30] sm:$0xff]
  %v38 = vld [vmem:[%s1 + $0x38] sm:$0xff]
  %v39 = vld [vmem:[%s1 + $0x40] sm:$0xff]
  %v40 = vld [vmem:[%s1 + $0x48] sm:$0xff]
  %v41 = vld [vmem:[%s1 + $0x50] sm:$0xff]
  %v42 = vld [vmem:[%s1 + $0x58] sm:$0xff]
  %v43 = vld [vmem:[%s1 + $0x60] sm:$0xff]
  %v44 = vld [vmem:[%s1 + $0x68] sm:$0xff]
  %v45 = vld [vmem:[%s1 + $0x70] sm:$0xff]
  %v46 = vld [vmem:[%s1 + $0x78] sm:$0xff]
  %v47 = vld [vmem:[%s1 + $0x80] sm:$0xff]
  %v48 = vld [vmem:[%s1 + $0x88] sm:$0xff]
  %v49 = vld [vmem:[%s1 + $0x90] sm:$0xff]
  %v50 = vld [vmem:[%s1 + $0x98] sm:$0xff]
  %v51 = vld [vmem:[%s2] sm:$0x3]
  %v53 = vlaneseq
  %v54 = vshrl.u32 %v53, 7
  %v55 = vsub.s32 0, %v54
  %v56 = vrot.slane %v51, %v55
  %v57 = vlaneseq
  %v58 = vshrl.u32 %v57, 7
  %v59 = vsub.s32 1, %v58
  %v60 = vrot.slane %v51, %v59
  %v65 = vunpack.c.l.b16 %v29
  %v66 = vunpack.c.h.b16 %v29
  %v67 = vunpack.c.l.b16 %v30
  %v68 = vunpack.c.h.b16 %v30
  %v69 = vpack.c.b16 %v67, %v65
  %v70 = vpack.c.b16 %v68, %v66
  %v92 = vunpack.c.l.b16 %v31
  %v93 = vunpack.c.h.b16 %v31
  %v94 = vunpack.c.l.b16 %v32
  %v95 = vunpack.c.h.b16 %v32
  %v96 = vunpack.c.l.b16 %v33
  %v97 = vunpack.c.h.b16 %v33
  %v98 = vunpack.c.l.b16 %v34
  %v99 = vunpack.c.h.b16 %v34
  %v100 = vunpack.c.l.b16 %v35
  %v101 = vunpack.c.h.b16 %v35
  %v102 = vunpack.c.l.b16 %v36
  %v103 = vunpack.c.h.b16 %v36
  %v104 = vunpack.c.l.b16 %v37
  %v105 = vunpack.c.h.b16 %v37
  %v106 = vunpack.c.l.b16 %v38
  %v107 = vunpack.c.h.b16 %v38
  %v108 = vunpack.c.l.b16 %v39
  %v109 = vunpack.c.h.b16 %v39
  %v110 = vunpack.c.l.b16 %v40
  %v111 = vunpack.c.h.b16 %v40
  %v112 = vunpack.c.l.b16 %v41
  %v113 = vunpack.c.h.b16 %v41
  %v114 = vunpack.c.l.b16 %v42
  %v115 = vunpack.c.h.b16 %v42
  %v116 = vunpack.c.l.b16 %v43
  %v117 = vunpack.c.h.b16 %v43
  %v118 = vunpack.c.l.b16 %v44
  %v119 = vunpack.c.h.b16 %v44
  %v120 = vunpack.c.l.b16 %v45
  %v121 = vunpack.c.h.b16 %v45
  %v122 = vunpack.c.l.b16 %v46
  %v123 = vunpack.c.h.b16 %v46
  %v124 = vunpack.c.l.b16 %v47
  %v125 = vunpack.c.h.b16 %v47
  %v126 = vunpack.c.l.b16 %v48
  %v127 = vunpack.c.h.b16 %v48
  %v128 = vunpack.c.l.b16 %v49
  %v129 = vunpack.c.h.b16 %v49
  %v130 = vunpack.c.l.b16 %v50
  %v131 = vunpack.c.h.b16 %v50
  %v132 = vpack.c.b16 %v94, %v92
  %v133 = vpack.c.b16 %v95, %v93
  %v134 = vpack.c.b16 %v98, %v96
  %v135 = vpack.c.b16 %v99, %v97
  %v136 = vpack.c.b16 %v102, %v100
  %v137 = vpack.c.b16 %v103, %v101
  %v138 = vpack.c.b16 %v106, %v104
  %v139 = vpack.c.b16 %v107, %v105
  %v140 = vpack.c.b16 %v110, %v108
  %v141 = vpack.c.b16 %v111, %v109
  %v142 = vpack.c.b16 %v114, %v112
  %v143 = vpack.c.b16 %v115, %v113
  %v144 = vpack.c.b16 %v118, %v116
  %v145 = vpack.c.b16 %v119, %v117
  %v146 = vpack.c.b16 %v122, %v120
  %v147 = vpack.c.b16 %v123, %v121
  %v148 = vpack.c.b16 %v126, %v124
  %v149 = vpack.c.b16 %v127, %v125
  %v150 = vpack.c.b16 %v130, %v128
  %v151 = vpack.c.b16 %v131, %v129
  %vm172 = vcmask 261120
  %v174 = vsel %vm172, %v70, 0
  %176 = vmatprep.subr.bf16.mxu0 %v133
  %177 = vmatpush1.bf16.msra.mxu0 %v132
  %178 = vmatprep.subr.bf16.mxu0 %v135
  %179 = vmatpush1.bf16.msra.mxu0 %v134
  %180 = vmatprep.subr.bf16.mxu0 %v137
  %181 = vmatpush1.bf16.msra.mxu0 %v136
  %182 = vmatprep.subr.bf16.mxu0 %v139
  %183 = vmatpush1.bf16.msra.mxu0 %v138
  %184 = vmatprep.subr.bf16.mxu0 %v141
  %185 = vmatpush1.bf16.msra.mxu0 %v140
  %186 = vmatprep.subr.bf16.mxu0 %v143
  %187 = vmatpush1.bf16.msra.mxu0 %v142
  %188 = vmatprep.subr.bf16.mxu0 %v145
  %189 = vmatpush1.bf16.msra.mxu0 %v144
  %190 = vmatprep.subr.bf16.mxu0 %v147
  %191 = vmatpush1.bf16.msra.mxu0 %v146
  %192 = vmatprep.subr.bf16.mxu0 %v149
  %193 = vmatpush1.bf16.msra.mxu0 %v148
  %194 = vmatprep.subr.bf16.mxu0 %v151
  %195 = vmatpush1.bf16.msra.mxu0 %v150
  %196 = vmatprep.subr.bf16.mxu0 0
  %197 = vmatpush1.bf16.msra.mxu0 0
  %198 = vmatprep.subr.bf16.mxu0 0
  %199 = vmatpush1.bf16.msra.mxu0 0
  %200 = vmatprep.subr.bf16.mxu0 0
  %201 = vmatpush1.bf16.msra.mxu0 0
  %202 = vmatprep.subr.bf16.mxu0 0
  %203 = vmatpush1.bf16.msra.mxu0 0
  %204 = vmatprep.subr.bf16.mxu0 0
  %205 = vmatpush1.bf16.msra.mxu0 0
  %206 = vmatprep.subr.bf16.mxu0 0
  %207 = vmatpush1.bf16.msra.mxu0 0
  %208 = vmatprep.mubr.bf16.mxu0 %v174
  %209 = vmatmul.mubr.bf16.gmra.mrb[0].mxu0 %v69
  %v210 = vpop.f32.mrb[0].mxu0
  %v211 = vadd.f32 %v56, %v210
  %v212 = vpop.f32.mrb[0].mxu0
  %v213 = vadd.f32 %v60, %v212
  %v214 = vpop.f32.mrb[0].mxu0
  %v215 = vadd.f32 %v56, %v214
  %v216 = vpop.f32.mrb[0].mxu0
  %v217 = vadd.f32 %v60, %v216
  %218 = vdwg.mxu0
  %v219 = vmax.f32 %v211, 0.0
  %v220 = vmax.f32 %v213, 0.0
  %v221 = vmax.f32 %v215, 0.0
  %v222 = vmax.f32 %v217, 0.0
  %v223 = vpack.c.bf16 %v221, %v219
  %v224 = vpack.c.bf16 %v222, %v220
  %v225 = vld [vmem:[%s3] sm:$0xf]
  %v226 = vld [vmem:[%s3 + $0x4] sm:$0xf]
  %v227 = vld [vmem:[%s3 + $0x8] sm:$0xf]
  %v228 = vld [vmem:[%s3 + $0xc] sm:$0xf]
  %v229 = vld [vmem:[%s3 + $0x10] sm:$0xf]
  %v230 = vld [vmem:[%s3 + $0x14] sm:$0xf]
  %v231 = vld [vmem:[%s3 + $0x18] sm:$0xf]
  %v232 = vld [vmem:[%s3 + $0x1c] sm:$0xf]
  %v233 = vld [vmem:[%s3 + $0x20] sm:$0xf]
  %v234 = vld [vmem:[%s3 + $0x24] sm:$0xf]
  %v235 = vld [vmem:[%s3 + $0x28] sm:$0xf]
  %v236 = vld [vmem:[%s3 + $0x2c] sm:$0xf]
  %v237 = vld [vmem:[%s3 + $0x30] sm:$0xf]
  %v238 = vld [vmem:[%s3 + $0x34] sm:$0xf]
  %v239 = vld [vmem:[%s3 + $0x38] sm:$0xf]
  %v240 = vld [vmem:[%s3 + $0x3c] sm:$0xf]
  %v241 = vld [vmem:[%s3 + $0x40] sm:$0xf]
  %v242 = vld [vmem:[%s3 + $0x44] sm:$0xf]
  %v243 = vld [vmem:[%s3 + $0x48] sm:$0xf]
  %v244 = vld [vmem:[%s3 + $0x4c] sm:$0xf]
  %v245 = vld [vmem:[%s3 + $0x50] sm:$0xf]
  %v246 = vld [vmem:[%s3 + $0x54] sm:$0xf]
  %v247 = vld [vmem:[%s3 + $0x58] sm:$0xf]
  %v248 = vld [vmem:[%s3 + $0x5c] sm:$0xf]
  %v249 = vld [vmem:[%s3 + $0x60] sm:$0xf]
  %v250 = vld [vmem:[%s3 + $0x64] sm:$0xf]
  %v251 = vld [vmem:[%s3 + $0x68] sm:$0xf]
  %v252 = vld [vmem:[%s3 + $0x6c] sm:$0xf]
  %v253 = vld [vmem:[%s3 + $0x70] sm:$0xf]
  %v254 = vld [vmem:[%s3 + $0x74] sm:$0xf]
  %v255 = vld [vmem:[%s3 + $0x78] sm:$0xf]
  %v256 = vld [vmem:[%s3 + $0x7c] sm:$0xf]
  %v257 = vld [vmem:[%s4] sm:$0x1]
  %v259 = vlaneseq
  %v260 = vshrl.u32 %v259, 7
  %v261 = vsub.s32 0, %v260
  %v262 = vrot.slane %v257, %v261
  %v296 = vunpack.c.l.b16 %v225
  %v297 = vunpack.c.l.b16 %v226
  %v298 = vunpack.c.l.b16 %v227
  %v299 = vunpack.c.l.b16 %v228
  %v300 = vunpack.c.l.b16 %v229
  %v301 = vunpack.c.l.b16 %v230
  %v302 = vunpack.c.l.b16 %v231
  %v303 = vunpack.c.l.b16 %v232
  %v304 = vunpack.c.l.b16 %v233
  %v305 = vunpack.c.l.b16 %v234
  %v306 = vunpack.c.l.b16 %v235
  %v307 = vunpack.c.l.b16 %v236
  %v308 = vunpack.c.l.b16 %v237
  %v309 = vunpack.c.l.b16 %v238
  %v310 = vunpack.c.l.b16 %v239
  %v311 = vunpack.c.l.b16 %v240
  %v312 = vunpack.c.l.b16 %v241
  %v313 = vunpack.c.l.b16 %v242
  %v314 = vunpack.c.l.b16 %v243
  %v315 = vunpack.c.l.b16 %v244
  %v316 = vunpack.c.l.b16 %v245
  %v317 = vunpack.c.l.b16 %v246
  %v318 = vunpack.c.l.b16 %v247
  %v319 = vunpack.c.l.b16 %v248
  %v320 = vunpack.c.l.b16 %v249
  %v321 = vunpack.c.l.b16 %v250
  %v322 = vunpack.c.l.b16 %v251
  %v323 = vunpack.c.l.b16 %v252
  %v324 = vunpack.c.l.b16 %v253
  %v325 = vunpack.c.l.b16 %v254
  %v326 = vunpack.c.l.b16 %v255
  %v327 = vunpack.c.l.b16 %v256
  %v328 = vpack.c.b16 %v297, %v296
  %v329 = vpack.c.b16 %v299, %v298
  %v330 = vpack.c.b16 %v301, %v300
  %v331 = vpack.c.b16 %v303, %v302
  %v332 = vpack.c.b16 %v305, %v304
  %v333 = vpack.c.b16 %v307, %v306
  %v334 = vpack.c.b16 %v309, %v308
  %v335 = vpack.c.b16 %v311, %v310
  %v336 = vpack.c.b16 %v313, %v312
  %v337 = vpack.c.b16 %v315, %v314
  %v338 = vpack.c.b16 %v317, %v316
  %v339 = vpack.c.b16 %v319, %v318
  %v340 = vpack.c.b16 %v321, %v320
  %v341 = vpack.c.b16 %v323, %v322
  %v342 = vpack.c.b16 %v325, %v324
  %v343 = vpack.c.b16 %v327, %v326
  %360 = vmatprep.subr.bf16.mxu0 0
  %361 = vmatpush1.bf16.msra.mxu0 %v328
  %362 = vmatprep.subr.bf16.mxu0 0
  %363 = vmatpush1.bf16.msra.mxu0 %v329
  %364 = vmatprep.subr.bf16.mxu0 0
  %365 = vmatpush1.bf16.msra.mxu0 %v330
  %366 = vmatprep.subr.bf16.mxu0 0
  %367 = vmatpush1.bf16.msra.mxu0 %v331
  %368 = vmatprep.subr.bf16.mxu0 0
  %369 = vmatpush1.bf16.msra.mxu0 %v332
  %370 = vmatprep.subr.bf16.mxu0 0
  %371 = vmatpush1.bf16.msra.mxu0 %v333
  %372 = vmatprep.subr.bf16.mxu0 0
  %373 = vmatpush1.bf16.msra.mxu0 %v334
  %374 = vmatprep.subr.bf16.mxu0 0
  %375 = vmatpush1.bf16.msra.mxu0 %v335
  %376 = vmatprep.subr.bf16.mxu0 0
  %377 = vmatpush1.bf16.msra.mxu0 %v336
  %378 = vmatprep.subr.bf16.mxu0 0
  %379 = vmatpush1.bf16.msra.mxu0 %v337
  %380 = vmatprep.subr.bf16.mxu0 0
  %381 = vmatpush1.bf16.msra.mxu0 %v338
  %382 = vmatprep.subr.bf16.mxu0 0
  %383 = vmatpush1.bf16.msra.mxu0 %v339
  %384 = vmatprep.subr.bf16.mxu0 0
  %385 = vmatpush1.bf16.msra.mxu0 %v340
  %386 = vmatprep.subr.bf16.mxu0 0
  %387 = vmatpush1.bf16.msra.mxu0 %v341
  %388 = vmatprep.subr.bf16.mxu0 0
  %389 = vmatpush1.bf16.msra.mxu0 %v342
  %390 = vmatprep.subr.bf16.mxu0 0
  %391 = vmatpush1.bf16.msra.mxu0 %v343
  %392 = vmatprep.mubr.bf16.mxu0 %v224
  %393 = vmatmul.mubr.bf16.gmra.mrb[0].mxu0 %v223
  %v394 = vpop.f32.mrb[0].mxu0
  %v395 = vadd.f32 %v262, %v394
  %v396 = vpop.f32.mrb[0].mxu0
  %v397 = vpop.f32.mrb[0].mxu0
  %v398 = vadd.f32 %v262, %v397
  %v399 = vpop.f32.mrb[0].mxu0
  %400 = vdwg.mxu0
  %v401 = vmax.f32 %v395, 0.0
  %v402 = vmax.f32 %v398, 0.0
  %v403 = vld [vmem:[%s5] sm:$0x1]
  %v405 = vlaneseq
  %v406 = vshrl.u32 %v405, 7
  %v407 = vsub.s32 0, %v406
  %v408 = vrot.slane %v403, %v407
  %v410 = vmul.f32 %v401, %v408
  %v411 = vmul.f32 %v402, %v408
  %412 = vadd.xlane.f32.xlu0 %v410
  %v413 = vpop.xlane.xlu0 %412
  %414 = vadd.xlane.f32.xlu0 %v411
  %v415 = vpop.xlane.xlu0 %414
  %v416 = vld [vmem:[#allocation2] sm:$0x1]
  %v418 = vlaneseq
  %v419 = vshrl.u32 %v418, 7
  %v420 = vsub.s32 0, %v419
  %v421 = vrot.slane %v416, %v420
  %v423 = vadd.f32 %v413, %v421
  %v424 = vadd.f32 %v415, %v421
  %vm425 = vcmask 7168
  %426 = vst.msk [vmem:[%s7] sm:$0xff] %vm425, %v423
  %427 = vst.msk [vmem:[%s7 + $0x8] sm:$0xff] %vm425, %v424
  // Predicated region
  $region30: #{reward_predictor.1} parent=0 // pred_check
    _
  $region31: #{reward_predictor.1} parent=0 // pred_check_branch
    %429 = sbr.rel (0) target = $region33
  $region32: #{reward_predictor.1} parent=0 // pred_region
    _
  $region33: #{reward_predictor.1} parent=0 // pred_fallthru
    _
  // Predicated region
  $region34: #{reward_predictor.1} parent=0 // pred_check
    _
  $region35: #{reward_predictor.1} parent=0 // pred_check_branch
    %431 = sbr.rel (0) target = $region37
  $region36: #{reward_predictor.1} parent=0 // pred_region
    _
  $region37: #{reward_predictor.1} parent=0 // pred_fallthru
    _

</llo_original>
